<compile_context>
chip_gen: v5e
topology: v5e:2x2
jax: 0.10.0
libtpu: 0.0.40
codegen_flags: <defaults>
</compile_context>

<pallas_src>
import functools

import jax
import jax.numpy as jnp
from jax.experimental import pallas as pl
from jax.experimental.pallas import tpu as pltpu

_LANE = 128


def _round_up(x, m):
    return ((x + m - 1) // m) * m


def _cdiv(a, b):
    return -(-a // b)


def _fused_mlp_kernel(*refs, layer_modes, tanh_flags):
    """refs = (xT_ref, w0, b0, w1, b1, ..., wN-1, bN-1, outT_ref).

    Transposed (batch-in-lanes) layout: every activation is (features, TB).
    Runs the whole Linear(+Tanh) chain for one batch tile, keeping every
    intermediate activation in vregs/VMEM (no HBM writeback between layers).
    """
    x_ref = refs[0]
    out_ref = refs[-1]
    wb = refs[1:-1]

    h = x_ref[...]
    if h.dtype != jnp.float32:
        h = h.astype(jnp.float32)

    for idx, (mode, apply_tanh) in enumerate(zip(layer_modes, tanh_flags)):
        w = wb[2 * idx][...]      # shape depends on mode, see wrapper
        b = wb[2 * idx + 1][...]  # (fan_out, 1) -> broadcasts along lanes
        if mode == "dot":
            # (fan_out, fan_in) @ (fan_in, TB) -> (fan_out, TB); MXU with
            # lane-dense N = TB.
            h = jnp.dot(w, h, preferred_element_type=jnp.float32)
        elif mode == "reduce":
            # fan_out == 1; w is (fan_in, 1).  VPU multiply + sublane
            # reduction (XLU) instead of an almost-empty M=1 MXU push/pop.
            h = jnp.sum(w * h, axis=0, keepdims=True)
        else:  # "bcast": fan_in == 1; w is (fan_out, 1); h is (1, TB).
            h = w * h
        h = h + b                 # VPU
        if apply_tanh:
            h = jnp.tanh(h)       # EUP
    out_ref[...] = h.astype(out_ref.dtype)


def fused_autoencoder(x, enc_params, dec_params, *, tb=4096):
    """Full encoder+decoder forward in one pallas_call, batch tiled on lanes."""
    params = list(enc_params) + list(dec_params)
    n_enc, n_dec = len(enc_params), len(dec_params)
    # Tanh after every layer except the last of each stack (matches
    # nn.Sequential built by DeepAutoEncoder).
    tanh_flags = tuple(
        [i < n_enc - 1 for i in range(n_enc)]
        + [i < n_dec - 1 for i in range(n_dec)]
    )

    B, Din = x.shape
    Dout = params[-1][0].shape[1]

    # --- Waste-minimizing, lane-aligned batch tiling -------------------------
    tb = max(_LANE, _round_up(tb, _LANE))
    n_tiles = max(1, _cdiv(B, tb))
    # Ensure >=2 "parallel" grid steps when the batch allows it, so both of
    # v7x's TensorCores get work (no-op win on 1-TC v5e/v6e, tiny overhead).
    if n_tiles == 1 and _round_up(B, _LANE) >= 2 * _LANE:
        n_tiles = 2
    TB = _round_up(_cdiv(B, n_tiles), _LANE)
    Bp = TB * n_tiles

    # --- Batch-in-lanes layout: work on x.T, pad batch (lane axis) -----------
    x_t = x.T
    if Bp != B:
        x_t = jnp.pad(x_t, ((0, 0), (0, Bp - B)))

    flat_inputs = [x_t]
    in_specs = [pl.BlockSpec((Din, TB), lambda i: (0, i))]
    layer_modes = []
    for (w, b) in params:
        fan_in, fan_out = w.shape
        if fan_in == 1:
            mode, wk = "bcast", w.reshape(fan_out, 1)    # outer product on VPU
        elif fan_out == 1:
            mode, wk = "reduce", w.reshape(fan_in, 1)    # mul + sublane reduce
        else:
            mode, wk = "dot", w.T                        # (fan_out, fan_in), MXU
        layer_modes.append(mode)
        bk = b.reshape(fan_out, 1)
        flat_inputs.append(wk)
        flat_inputs.append(bk)
        # Full-array blocks, same block index every grid step -> resident weights.
        in_specs.append(pl.BlockSpec(wk.shape, lambda i: (0, 0)))
        in_specs.append(pl.BlockSpec(bk.shape, lambda i: (0, 0)))

    # Advisory cost estimate for XLA's scheduler (unpadded B, honest numbers).
    flops = 2 * B * sum(w.shape[0] * w.shape[1] for (w, _) in params)
    transcendentals = B * sum(
        w.shape[1] for (w, _), f in zip(params, tanh_flags) if f
    )
    bytes_accessed = (
        B * Din * x.dtype.itemsize
        + sum(w.size * w.dtype.itemsize + b.size * b.dtype.itemsize
              for (w, b) in params)
        + B * Dout * x.dtype.itemsize
    )

    kernel = functools.partial(
        _fused_mlp_kernel,
        layer_modes=tuple(layer_modes),
        tanh_flags=tanh_flags,
    )
    out_t = pl.pallas_call(
        kernel,
        out_shape=jax.ShapeDtypeStruct((Dout, Bp), x.dtype),
        grid=(n_tiles,),
        in_specs=in_specs,
        out_specs=pl.BlockSpec((Dout, TB), lambda i: (0, i)),
        compiler_params=pltpu.CompilerParams(
            dimension_semantics=("parallel",),
        ),
        cost_estimate=pl.CostEstimate(
            flops=flops,
            transcendentals=transcendentals,
            bytes_accessed=bytes_accessed,
        ),
    )(*flat_inputs)
    # Back to (B, Dout) row-major batch layout.
    return out_t[:, :B].T


def init_mlp_params(key, dims):
    """PyTorch nn.Linear default init: U(-1/sqrt(fan_in), +1/sqrt(fan_in))."""
    params = []
    for i in range(len(dims) - 1):
        fan_in, fan_out = dims[i], dims[i + 1]
        key, kw, kb = jax.random.split(key, 3)
        bound = 1.0 / jnp.sqrt(jnp.float32(fan_in))
        w = jax.random.uniform(kw, (fan_in, fan_out), jnp.float32, -bound, bound)
        b = jax.random.uniform(kb, (1, fan_out), jnp.float32, -bound, bound)
        params.append((w, b))
    return key, params


if __name__ == "__main__":
    # Matches the module's intended use: input positions of shape [any, 2].
    encoder_dims = [2, 32, 32, 1]
    decoder_dims = [1, 32, 32, 2]
    batch = 8

    key = jax.random.PRNGKey(0)
    key, enc_params = init_mlp_params(key, encoder_dims)
    key, dec_params = init_mlp_params(key, decoder_dims)
    key, kx = jax.random.split(key)
    x = jax.random.normal(kx, (batch, encoder_dims[0]), jnp.float32)

    fwd = jax.jit(functools.partial(fused_autoencoder, tb=4096))
    out = fwd(x, enc_params, dec_params)
    jax.block_until_ready(out)

    assert out.shape == (batch, decoder_dims[-1]), out.shape
    assert out.dtype == jnp.float32

    # Pure-JAX reference for sanity (Dropout is identity in eval mode).
    def ref_mlp(h, params):
        n = len(params)
        for i, (w, b) in enumerate(params):
            h = h @ w + b
            if i < n - 1:
                h = jnp.tanh(h)
        return h

    ref = ref_mlp(ref_mlp(x, enc_params), dec_params)
    assert jnp.allclose(out, ref, atol=1e-5, rtol=1e-5)

    print("KERNEL_OK")
</pallas_src>

<mosaic_0001>
module attributes {stable_mosaic.version = 11 : i64} {
  func.func @_fused_mlp_kernel(%arg0: i32, %arg1: memref<2x128xf32, #tpu.memory_space<vmem>>, %arg2: memref<32x2xf32, #tpu.memory_space<vmem>>, %arg3: memref<32x1xf32, #tpu.memory_space<vmem>>, %arg4: memref<32x32xf32, #tpu.memory_space<vmem>>, %arg5: memref<32x1xf32, #tpu.memory_space<vmem>>, %arg6: memref<32x1xf32, #tpu.memory_space<vmem>>, %arg7: memref<1x1xf32, #tpu.memory_space<vmem>>, %arg8: memref<32x1xf32, #tpu.memory_space<vmem>>, %arg9: memref<32x1xf32, #tpu.memory_space<vmem>>, %arg10: memref<32x32xf32, #tpu.memory_space<vmem>>, %arg11: memref<32x1xf32, #tpu.memory_space<vmem>>, %arg12: memref<2x32xf32, #tpu.memory_space<vmem>>, %arg13: memref<2x1xf32, #tpu.memory_space<vmem>>, %arg14: memref<2x128xf32, #tpu.memory_space<vmem>>) attributes {dimension_semantics = [#tpu.dimension_semantics<parallel>], iteration_bounds = array<i64: 1>, scalar_prefetch = 0 : i64, scratch_operands = 0 : i64, tpu.core_type = #tpu.core_type<tc>, window_params = [{transform_indices = @transform_0, window_bounds = array<i64: 2, 128>}, {pipeline_mode = #tpu.pipeline_mode<synchronous>, transform_indices = @transform_1, window_bounds = array<i64: 32, 2>}, {pipeline_mode = #tpu.pipeline_mode<synchronous>, transform_indices = @transform_2, window_bounds = array<i64: 32, 1>}, {pipeline_mode = #tpu.pipeline_mode<synchronous>, transform_indices = @transform_3, window_bounds = array<i64: 32, 32>}, {pipeline_mode = #tpu.pipeline_mode<synchronous>, transform_indices = @transform_4, window_bounds = array<i64: 32, 1>}, {pipeline_mode = #tpu.pipeline_mode<synchronous>, transform_indices = @transform_5, window_bounds = array<i64: 32, 1>}, {pipeline_mode = #tpu.pipeline_mode<synchronous>, transform_indices = @transform_6, window_bounds = array<i64: 1, 1>}, {pipeline_mode = #tpu.pipeline_mode<synchronous>, transform_indices = @transform_7, window_bounds = array<i64: 32, 1>}, {pipeline_mode = #tpu.pipeline_mode<synchronous>, transform_indices = @transform_8, window_bounds = array<i64: 32, 1>}, {pipeline_mode = #tpu.pipeline_mode<synchronous>, transform_indices = @transform_9, window_bounds = array<i64: 32, 32>}, {pipeline_mode = #tpu.pipeline_mode<synchronous>, transform_indices = @transform_10, window_bounds = array<i64: 32, 1>}, {pipeline_mode = #tpu.pipeline_mode<synchronous>, transform_indices = @transform_11, window_bounds = array<i64: 2, 32>}, {pipeline_mode = #tpu.pipeline_mode<synchronous>, transform_indices = @transform_12, window_bounds = array<i64: 2, 1>}, {transform_indices = @transform_13, window_bounds = array<i64: 2, 128>}]} {
    %c0 = arith.constant 0 : index
    %c0_0 = arith.constant 0 : index
    %0 = vector.load %arg1[%c0, %c0_0] : memref<2x128xf32, #tpu.memory_space<vmem>>, vector<2x128xf32>
    %c0_1 = arith.constant 0 : index
    %c0_2 = arith.constant 0 : index
    %1 = vector.load %arg2[%c0_1, %c0_2] : memref<32x2xf32, #tpu.memory_space<vmem>>, vector<32x2xf32>
    %c0_3 = arith.constant 0 : index
    %c0_4 = arith.constant 0 : index
    %2 = vector.load %arg3[%c0_3, %c0_4] : memref<32x1xf32, #tpu.memory_space<vmem>>, vector<32x1xf32>
    %cst = arith.constant dense<0.000000e+00> : vector<32x128xf32>
    %3 = tpu.matmul %1, %0, %cst {dimension_numbers = #tpu.dot_dimension_numbers<[1], [0], [0], [1], [0, 0, 1, 1], [], []>} : vector<32x2xf32>, vector<2x128xf32>, vector<32x128xf32> -> vector<32x128xf32>
    %4 = vector.broadcast %2 : vector<32x1xf32> to vector<32x128xf32>
    %5 = arith.addf %3, %4 : vector<32x128xf32>
    %6 = math.tanh %5 : vector<32x128xf32>
    %c0_5 = arith.constant 0 : index
    %c0_6 = arith.constant 0 : index
    %7 = vector.load %arg4[%c0_5, %c0_6] : memref<32x32xf32, #tpu.memory_space<vmem>>, vector<32x32xf32>
    %c0_7 = arith.constant 0 : index
    %c0_8 = arith.constant 0 : index
    %8 = vector.load %arg5[%c0_7, %c0_8] : memref<32x1xf32, #tpu.memory_space<vmem>>, vector<32x1xf32>
    %cst_9 = arith.constant dense<0.000000e+00> : vector<32x128xf32>
    %9 = tpu.matmul %7, %6, %cst_9 {dimension_numbers = #tpu.dot_dimension_numbers<[1], [0], [0], [1], [0, 0, 1, 1], [], []>} : vector<32x32xf32>, vector<32x128xf32>, vector<32x128xf32> -> vector<32x128xf32>
    %10 = vector.broadcast %8 : vector<32x1xf32> to vector<32x128xf32>
    %11 = arith.addf %9, %10 : vector<32x128xf32>
    %12 = math.tanh %11 : vector<32x128xf32>
    %c0_10 = arith.constant 0 : index
    %c0_11 = arith.constant 0 : index
    %13 = vector.load %arg6[%c0_10, %c0_11] : memref<32x1xf32, #tpu.memory_space<vmem>>, vector<32x1xf32>
    %c0_12 = arith.constant 0 : index
    %c0_13 = arith.constant 0 : index
    %14 = vector.load %arg7[%c0_12, %c0_13] : memref<1x1xf32, #tpu.memory_space<vmem>>, vector<1x1xf32>
    %15 = vector.broadcast %13 : vector<32x1xf32> to vector<32x128xf32>
    %16 = arith.mulf %15, %12 : vector<32x128xf32>
    %cst_14 = arith.constant dense<0.000000e+00> : vector<128xf32>
    %17 = vector.multi_reduction <add>, %16, %cst_14 [0] : vector<32x128xf32> to vector<128xf32>
    %18 = vector.shape_cast %17 : vector<128xf32> to vector<1x128xf32>
    %19 = vector.broadcast %14 : vector<1x1xf32> to vector<1x128xf32>
    %20 = arith.addf %18, %19 : vector<1x128xf32>
    %c0_15 = arith.constant 0 : index
    %c0_16 = arith.constant 0 : index
    %21 = vector.load %arg8[%c0_15, %c0_16] : memref<32x1xf32, #tpu.memory_space<vmem>>, vector<32x1xf32>
    %c0_17 = arith.constant 0 : index
    %c0_18 = arith.constant 0 : index
    %22 = vector.load %arg9[%c0_17, %c0_18] : memref<32x1xf32, #tpu.memory_space<vmem>>, vector<32x1xf32>
    %23 = vector.broadcast %21 : vector<32x1xf32> to vector<32x128xf32>
    %24 = vector.broadcast %20 : vector<1x128xf32> to vector<32x128xf32>
    %25 = arith.mulf %23, %24 : vector<32x128xf32>
    %26 = vector.broadcast %22 : vector<32x1xf32> to vector<32x128xf32>
    %27 = arith.addf %25, %26 : vector<32x128xf32>
    %28 = math.tanh %27 : vector<32x128xf32>
    %c0_19 = arith.constant 0 : index
    %c0_20 = arith.constant 0 : index
    %29 = vector.load %arg10[%c0_19, %c0_20] : memref<32x32xf32, #tpu.memory_space<vmem>>, vector<32x32xf32>
    %c0_21 = arith.constant 0 : index
    %c0_22 = arith.constant 0 : index
    %30 = vector.load %arg11[%c0_21, %c0_22] : memref<32x1xf32, #tpu.memory_space<vmem>>, vector<32x1xf32>
    %cst_23 = arith.constant dense<0.000000e+00> : vector<32x128xf32>
    %31 = tpu.matmul %29, %28, %cst_23 {dimension_numbers = #tpu.dot_dimension_numbers<[1], [0], [0], [1], [0, 0, 1, 1], [], []>} : vector<32x32xf32>, vector<32x128xf32>, vector<32x128xf32> -> vector<32x128xf32>
    %32 = vector.broadcast %30 : vector<32x1xf32> to vector<32x128xf32>
    %33 = arith.addf %31, %32 : vector<32x128xf32>
    %34 = math.tanh %33 : vector<32x128xf32>
    %c0_24 = arith.constant 0 : index
    %c0_25 = arith.constant 0 : index
    %35 = vector.load %arg12[%c0_24, %c0_25] : memref<2x32xf32, #tpu.memory_space<vmem>>, vector<2x32xf32>
    %c0_26 = arith.constant 0 : index
    %c0_27 = arith.constant 0 : index
    %36 = vector.load %arg13[%c0_26, %c0_27] : memref<2x1xf32, #tpu.memory_space<vmem>>, vector<2x1xf32>
    %cst_28 = arith.constant dense<0.000000e+00> : vector<2x128xf32>
    %37 = tpu.matmul %35, %34, %cst_28 {dimension_numbers = #tpu.dot_dimension_numbers<[1], [0], [0], [1], [0, 0, 1, 1], [], []>} : vector<2x32xf32>, vector<32x128xf32>, vector<2x128xf32> -> vector<2x128xf32>
    %38 = vector.broadcast %36 : vector<2x1xf32> to vector<2x128xf32>
    %39 = arith.addf %37, %38 : vector<2x128xf32>
    %c0_29 = arith.constant 0 : index
    %c0_30 = arith.constant 0 : index
    %40 = vector.load %arg14[%c0_29, %c0_30] : memref<2x128xf32, #tpu.memory_space<vmem>>, vector<2x128xf32>
    tpu.vector_store %arg14[%c0_29, %c0_30], %39 {strides = array<i32>} : memref<2x128xf32, #tpu.memory_space<vmem>>, vector<2x128xf32>,
    return
  }
  func.func @transform_0(%arg0: i32) -> (i32, i32) {
    %c0_i32 = arith.constant 0 : i32
    %c0_i32_0 = arith.constant 0 : i32
    return %c0_i32, %arg0 : i32, i32
  }
  func.func @transform_1(%arg0: i32) -> (i32, i32) {
    %c0_i32 = arith.constant 0 : i32
    %c0_i32_0 = arith.constant 0 : i32
    %c0_i32_1 = arith.constant 0 : i32
    return %c0_i32, %c0_i32_0 : i32, i32
  }
  func.func @transform_2(%arg0: i32) -> (i32, i32) {
    %c0_i32 = arith.constant 0 : i32
    %c0_i32_0 = arith.constant 0 : i32
    %c0_i32_1 = arith.constant 0 : i32
    return %c0_i32, %c0_i32_0 : i32, i32
  }
  func.func @transform_3(%arg0: i32) -> (i32, i32) {
    %c0_i32 = arith.constant 0 : i32
    %c0_i32_0 = arith.constant 0 : i32
    %c0_i32_1 = arith.constant 0 : i32
    return %c0_i32, %c0_i32_0 : i32, i32
  }
  func.func @transform_4(%arg0: i32) -> (i32, i32) {
    %c0_i32 = arith.constant 0 : i32
    %c0_i32_0 = arith.constant 0 : i32
    %c0_i32_1 = arith.constant 0 : i32
    return %c0_i32, %c0_i32_0 : i32, i32
  }
  func.func @transform_5(%arg0: i32) -> (i32, i32) {
    %c0_i32 = arith.constant 0 : i32
    %c0_i32_0 = arith.constant 0 : i32
    %c0_i32_1 = arith.constant 0 : i32
    return %c0_i32, %c0_i32_0 : i32, i32
  }
  func.func @transform_6(%arg0: i32) -> (i32, i32) {
    %c0_i32 = arith.constant 0 : i32
    %c0_i32_0 = arith.constant 0 : i32
    %c0_i32_1 = arith.constant 0 : i32
    return %c0_i32, %c0_i32_0 : i32, i32
  }
  func.func @transform_7(%arg0: i32) -> (i32, i32) {
    %c0_i32 = arith.constant 0 : i32
    %c0_i32_0 = arith.constant 0 : i32
    %c0_i32_1 = arith.constant 0 : i32
    return %c0_i32, %c0_i32_0 : i32, i32
  }
  func.func @transform_8(%arg0: i32) -> (i32, i32) {
    %c0_i32 = arith.constant 0 : i32
    %c0_i32_0 = arith.constant 0 : i32
    %c0_i32_1 = arith.constant 0 : i32
    return %c0_i32, %c0_i32_0 : i32, i32
  }
  func.func @transform_9(%arg0: i32) -> (i32, i32) {
    %c0_i32 = arith.constant 0 : i32
    %c0_i32_0 = arith.constant 0 : i32
    %c0_i32_1 = arith.constant 0 : i32
    return %c0_i32, %c0_i32_0 : i32, i32
  }
  func.func @transform_10(%arg0: i32) -> (i32, i32) {
    %c0_i32 = arith.constant 0 : i32
    %c0_i32_0 = arith.constant 0 : i32
    %c0_i32_1 = arith.constant 0 : i32
    return %c0_i32, %c0_i32_0 : i32, i32
  }
  func.func @transform_11(%arg0: i32) -> (i32, i32) {
    %c0_i32 = arith.constant 0 : i32
    %c0_i32_0 = arith.constant 0 : i32
    %c0_i32_1 = arith.constant 0 : i32
    return %c0_i32, %c0_i32_0 : i32, i32
  }
  func.func @transform_12(%arg0: i32) -> (i32, i32) {
    %c0_i32 = arith.constant 0 : i32
    %c0_i32_0 = arith.constant 0 : i32
    %c0_i32_1 = arith.constant 0 : i32
    return %c0_i32, %c0_i32_0 : i32, i32
  }
  func.func @transform_13(%arg0: i32) -> (i32, i32) {
    %c0_i32 = arith.constant 0 : i32
    %c0_i32_0 = arith.constant 0 : i32
    return %c0_i32, %arg0 : i32, i32
  }
}

</mosaic_0001>

<llo_original>
// kernel: fused_autoencoder.1
$region0: #{fused_autoencoder.1}
  #allocation0 [shape = 'u32[]', space=smem, size = 0x4, offset = 0x4, fixed_abs, tag = 'smem constant byte address 0x4 - core index']
  #allocation1 [shape = 'u32[72,128]{1,0:T(1,128)}', space=vmem, size = 0x9000, scoped, tag = 'internal scratch']
  #allocation2 [shape = 'f32[1,1]{1,0:T(1,128)S(1)}', space=vmem, size = 0x200, scoped, tag = 'scoped memory for fused_autoencoder.1']
  %s0 = inlined_call_operand.vmem [shape: f32[2,128], index: 0, kind: input, shape index: {}]
  %s1 = inlined_call_operand.vmem [shape: f32[32,2], index: 1, kind: input, shape index: {}]
  %s2 = inlined_call_operand.vmem [shape: f32[32,1], index: 2, kind: input, shape index: {}]
  %s3 = inlined_call_operand.vmem [shape: f32[32,32], index: 3, kind: input, shape index: {}]
  %s4 = inlined_call_operand.vmem [shape: f32[32,1], index: 4, kind: input, shape index: {}]
  %s5 = inlined_call_operand.vmem [shape: f32[32,1], index: 5, kind: input, shape index: {}]
  %s6 = inlined_call_operand.<no memory space> [shape: f32[1,1], index: 6, kind: input, shape index: {}]
  %s7 = inlined_call_operand.vmem [shape: f32[32,1], index: 7, kind: input, shape index: {}]
  %s8 = inlined_call_operand.vmem [shape: f32[32,1], index: 8, kind: input, shape index: {}]
  %s9 = inlined_call_operand.vmem [shape: f32[32,32], index: 9, kind: input, shape index: {}]
  %s10 = inlined_call_operand.vmem [shape: f32[32,1], index: 10, kind: input, shape index: {}]
  %s11 = inlined_call_operand.vmem [shape: f32[2,32], index: 11, kind: input, shape index: {}]
  %s12 = inlined_call_operand.vmem [shape: f32[2,1], index: 12, kind: input, shape index: {}]
  %s13 = inlined_call_operand.vmem [shape: f32[2,128], index: 13, kind: output, shape index: {}]
  %s14 = sld [smem:[#allocation0]]
  $region62: #{fused_autoencoder.1} parent=0
    _
  %s16 = ssub.s32 1, %s14
  %s17 = scalar_select 0, %s16, %s14
  %v18 = vstv %s6
  %19 = vst [vmem:[#allocation2] sm:$0x1] %v18
  // Predicated region
  $region2: #{fused_autoencoder.1} parent=0 // pred_check
    _
  $region3: #{fused_autoencoder.1} parent=0 // pred_check_branch
    %21 = sbr.rel (0) target = $region5
  $region4: #{fused_autoencoder.1} parent=0 // pred_region
    _
  $region5: #{fused_autoencoder.1} parent=0 // pred_fallthru
    _
  // Predicated region
  $region6: #{fused_autoencoder.1} parent=0 // pred_check
    _
  $region7: #{fused_autoencoder.1} parent=0 // pred_check_branch
    %23 = sbr.rel (0) target = $region9
  $region8: #{fused_autoencoder.1} parent=0 // pred_region
    _
  $region9: #{fused_autoencoder.1} parent=0 // pred_fallthru
    _
  // Predicated region
  $region10: #{fused_autoencoder.1} parent=0 // pred_check
    _
  $region11: #{fused_autoencoder.1} parent=0 // pred_check_branch
    %25 = sbr.rel (0) target = $region13
  $region12: #{fused_autoencoder.1} parent=0 // pred_region
    _
  $region13: #{fused_autoencoder.1} parent=0 // pred_fallthru
    _
  // Predicated region
  $region14: #{fused_autoencoder.1} parent=0 // pred_check
    _
  $region15: #{fused_autoencoder.1} parent=0 // pred_check_branch
    %27 = sbr.rel (0) target = $region17
  $region16: #{fused_autoencoder.1} parent=0 // pred_region
    _
  $region17: #{fused_autoencoder.1} parent=0 // pred_fallthru
    _
  // Predicated region
  $region18: #{fused_autoencoder.1} parent=0 // pred_check
    _
  $region19: #{fused_autoencoder.1} parent=0 // pred_check_branch
    %29 = sbr.rel (0) target = $region21
  $region20: #{fused_autoencoder.1} parent=0 // pred_region
    _
  $region21: #{fused_autoencoder.1} parent=0 // pred_fallthru
    _
  // Predicated region
  $region22: #{fused_autoencoder.1} parent=0 // pred_check
    _
  $region23: #{fused_autoencoder.1} parent=0 // pred_check_branch
    %31 = sbr.rel (0) target = $region25
  $region24: #{fused_autoencoder.1} parent=0 // pred_region
    _
  $region25: #{fused_autoencoder.1} parent=0 // pred_fallthru
    _
  // Predicated region
  $region26: #{fused_autoencoder.1} parent=0 // pred_check
    _
  $region27: #{fused_autoencoder.1} parent=0 // pred_check_branch
    %33 = sbr.rel (0) target = $region29
  $region28: #{fused_autoencoder.1} parent=0 // pred_region
    _
  $region29: #{fused_autoencoder.1} parent=0 // pred_fallthru
    _
  // Predicated region
  $region30: #{fused_autoencoder.1} parent=0 // pred_check
    _
  $region31: #{fused_autoencoder.1} parent=0 // pred_check_branch
    %35 = sbr.rel (0) target = $region33
  $region32: #{fused_autoencoder.1} parent=0 // pred_region
    _
  $region33: #{fused_autoencoder.1} parent=0 // pred_fallthru
    _
  // Predicated region
  $region34: #{fused_autoencoder.1} parent=0 // pred_check
    _
  $region35: #{fused_autoencoder.1} parent=0 // pred_check_branch
    %37 = sbr.rel (0) target = $region37
  $region36: #{fused_autoencoder.1} parent=0 // pred_region
    _
  $region37: #{fused_autoencoder.1} parent=0 // pred_fallthru
    _
  // Predicated region
  $region38: #{fused_autoencoder.1} parent=0 // pred_check
    _
  $region39: #{fused_autoencoder.1} parent=0 // pred_check_branch
    %39 = sbr.rel (0) target = $region41
  $region40: #{fused_autoencoder.1} parent=0 // pred_region
    _
  $region41: #{fused_autoencoder.1} parent=0 // pred_fallthru
    _
  // Predicated region
  $region42: #{fused_autoencoder.1} parent=0 // pred_check
    _
  $region43: #{fused_autoencoder.1} parent=0 // pred_check_branch
    %41 = sbr.rel (0) target = $region45
  $region44: #{fused_autoencoder.1} parent=0 // pred_region
    _
  $region45: #{fused_autoencoder.1} parent=0 // pred_fallthru
    _
  // Predicated region
  $region46: #{fused_autoencoder.1} parent=0 // pred_check
    _
  $region47: #{fused_autoencoder.1} parent=0 // pred_check_branch
    %43 = sbr.rel (0) target = $region49
  $region48: #{fused_autoencoder.1} parent=0 // pred_region
    _
  $region49: #{fused_autoencoder.1} parent=0 // pred_fallthru
    _
  // Predicated region
  $region50: #{fused_autoencoder.1} parent=0 // pred_check
    _
  $region51: #{fused_autoencoder.1} parent=0 // pred_check_branch
    %45 = sbr.rel (0) target = $region53
  $region52: #{fused_autoencoder.1} parent=0 // pred_region
    _
  $region53: #{fused_autoencoder.1} parent=0 // pred_fallthru
    _
  %v46 = vld [vmem:[%s0] sm:$0x3]
  %v47 = vld [vmem:[%s1] sm:$0xff]
  %v48 = vld [vmem:[%s1 + $0x8] sm:$0xff]
  %v49 = vld [vmem:[%s1 + $0x10] sm:$0xff]
  %v50 = vld [vmem:[%s1 + $0x18] sm:$0xff]
  %v51 = vld [vmem:[%s2] sm:$0xff]
  %v52 = vld [vmem:[%s2 + $0x8] sm:$0xff]
  %v53 = vld [vmem:[%s2 + $0x10] sm:$0xff]
  %v54 = vld [vmem:[%s2 + $0x18] sm:$0xff]
  %56 = vset.pattern.permute.xlu0 0
  %57 = vperm.xlu0 %56, %v51
  %v58 = vpop.permute.xlu0 %57
  %61 = vset.pattern.permute.xlu0 0
  %62 = vperm.xlu0 %61, %v52
  %v63 = vpop.permute.xlu0 %62
  %66 = vset.pattern.permute.xlu0 0
  %67 = vperm.xlu0 %66, %v53
  %v68 = vpop.permute.xlu0 %67
  %71 = vset.pattern.permute.xlu0 0
  %72 = vperm.xlu0 %71, %v54
  %v73 = vpop.permute.xlu0 %72
  %vm75 = vcmask 15360
  %v77 = vsel %vm75, %v47, 0
  %v80 = vsel %vm75, %v48, 0
  %v83 = vsel %vm75, %v49, 0
  %v86 = vsel %vm75, %v50, 0
  %vm88 = vcmask 1041408
  %v90 = vsel %vm88, %v46, 0
  %92 = vmatpush.msra.mxu0 0.0
  %93 = vmatpush.msra.mxu0 0.0
  %94 = vmatpush.msra.mxu0 0.0
  %95 = vmatpush.msra.mxu0 0.0
  %96 = vmatpush.msra.mxu0 0.0
  %97 = vmatpush.msra.mxu0 0.0
  %98 = vmatpush.msra.mxu0 0.0
  %99 = vmatpush.msra.mxu0 0.0
  %100 = vmatpush.msra.mxu0 0.0
  %101 = vmatpush.msra.mxu0 0.0
  %102 = vmatpush.msra.mxu0 0.0
  %103 = vmatpush.msra.mxu0 0.0
  %104 = vmatpush.msra.mxu0 0.0
  %105 = vmatpush.msra.mxu0 0.0
  %106 = vmatpush.msra.mxu0 0.0
  %107 = vmatpush.msra.mxu0 %v90
  %108 = vmatmul.f32.gmra.mxu0 %v77
  %v109 = vpop.f32.mrf.mxu0
  %v110 = vadd.f32 %v58, %v109
  %111 = vmatmul.f32.gmra.mxu0 %v80
  %v112 = vpop.f32.mrf.mxu0
  %v113 = vadd.f32 %v63, %v112
  %114 = vmatmul.f32.gmra.mxu0 %v83
  %v115 = vpop.f32.mrf.mxu0
  %v116 = vadd.f32 %v68, %v115
  %117 = vmatmul.f32.gmra.mxu0 %v86
  %v118 = vpop.f32.mrf.mxu0
  %v119 = vadd.f32 %v73, %v118
  %120 = vdwg.mxu0
  %v121 = vtanh.pop %v110
  %v122 = vtanh.pop %v113
  %v123 = vtanh.pop %v116
  %v124 = vtanh.pop %v119
  %v125 = vld [vmem:[%s3] sm:$0xff]
  %v126 = vld [vmem:[%s3 + $0x8] sm:$0xff]
  %v127 = vld [vmem:[%s3 + $0x10] sm:$0xff]
  %v128 = vld [vmem:[%s3 + $0x18] sm:$0xff]
  %v129 = vld [vmem:[%s4] sm:$0xff]
  %v130 = vld [vmem:[%s4 + $0x8] sm:$0xff]
  %v131 = vld [vmem:[%s4 + $0x10] sm:$0xff]
  %v132 = vld [vmem:[%s4 + $0x18] sm:$0xff]
  %134 = vset.pattern.permute.xlu0 0
  %135 = vperm.xlu0 %134, %v129
  %v136 = vpop.permute.xlu0 %135
  %139 = vset.pattern.permute.xlu0 0
  %140 = vperm.xlu0 %139, %v130
  %v141 = vpop.permute.xlu0 %140
  %144 = vset.pattern.permute.xlu0 0
  %145 = vperm.xlu0 %144, %v131
  %v146 = vpop.permute.xlu0 %145
  %149 = vset.pattern.permute.xlu0 0
  %150 = vperm.xlu0 %149, %v132
  %v151 = vpop.permute.xlu0 %150
  %vm153 = vcmask 261120
  %v155 = vsel %vm153, %v125, 0
  %v158 = vsel %vm153, %v126, 0
  %v161 = vsel %vm153, %v127, 0
  %v164 = vsel %vm153, %v128, 0
  %166 = vmatpush.msra.mxu0 0.0
  %167 = vmatpush.msra.mxu0 0.0
  %168 = vmatpush.msra.mxu0 0.0
  %169 = vmatpush.msra.mxu0 0.0
  %170 = vmatpush.msra.mxu0 0.0
  %171 = vmatpush.msra.mxu0 0.0
  %172 = vmatpush.msra.mxu0 0.0
  %173 = vmatpush.msra.mxu0 0.0
  %174 = vmatpush.msra.mxu0 0.0
  %175 = vmatpush.msra.mxu0 0.0
  %176 = vmatpush.msra.mxu0 0.0
  %177 = vmatpush.msra.mxu0 0.0
  %178 = vmatpush.msra.mxu0 %v124
  %179 = vmatpush.msra.mxu0 %v123
  %180 = vmatpush.msra.mxu0 %v122
  %181 = vmatpush.msra.mxu0 %v121
  %182 = vmatmul.f32.gmra.mxu0 %v155
  %v183 = vpop.f32.mrf.mxu0
  %v184 = vadd.f32 %v136, %v183
  %185 = vmatmul.f32.gmra.mxu0 %v158
  %v186 = vpop.f32.mrf.mxu0
  %v187 = vadd.f32 %v141, %v186
  %188 = vmatmul.f32.gmra.mxu0 %v161
  %v189 = vpop.f32.mrf.mxu0
  %v190 = vadd.f32 %v146, %v189
  %191 = vmatmul.f32.gmra.mxu0 %v164
  %v192 = vpop.f32.mrf.mxu0
  %v193 = vadd.f32 %v151, %v192
  %194 = vdwg.mxu0
  %v195 = vtanh.pop %v184
  %v196 = vtanh.pop %v187
  %v197 = vtanh.pop %v190
  %v198 = vtanh.pop %v193
  %v199 = vld [vmem:[%s5] sm:$0xff]
  %v200 = vld [vmem:[%s5 + $0x8] sm:$0xff]
  %v201 = vld [vmem:[%s5 + $0x10] sm:$0xff]
  %v202 = vld [vmem:[%s5 + $0x18] sm:$0xff]
  %v203 = vld [vmem:[#allocation2] sm:$0x1]
  %205 = vset.pattern.permute.xlu0 0
  %206 = vperm.xlu0 %205, %v199
  %v207 = vpop.permute.xlu0 %206
  %210 = vset.pattern.permute.xlu0 0
  %211 = vperm.xlu0 %210, %v200
  %v212 = vpop.permute.xlu0 %211
  %215 = vset.pattern.permute.xlu0 0
  %216 = vperm.xlu0 %215, %v201
  %v217 = vpop.permute.xlu0 %216
  %220 = vset.pattern.permute.xlu0 0
  %221 = vperm.xlu0 %220, %v202
  %v222 = vpop.permute.xlu0 %221
  %v224 = vmul.f32 %v207, %v195
  %v225 = vmul.f32 %v212, %v196
  %v226 = vmul.f32 %v217, %v197
  %v227 = vmul.f32 %v222, %v198
  %v228 = vadd.f32 %v224, %v225
  %v229 = vadd.f32 %v228, %v226
  %v230 = vadd.f32 %v229, %v227
  %v231 = vrot.slane %v230, 4
  %v232 = vadd.f32 %v230, %v231
  %v233 = vrot.slane %v232, 2
  %v234 = vadd.f32 %v232, %v233
  %v235 = vrot.slane %v234, 1
  %v236 = vadd.f32 %v234, %v235
  %238 = vset.pattern.permute.xlu0 0
  %239 = vperm.xlu0 %238, %v203
  %v240 = vpop.permute.xlu0 %239
  %v242 = vperm.slane %v240, 0
  %v243 = vadd.f32 %v236, %v242
  %v244 = vld [vmem:[%s7] sm:$0xff]
  %v245 = vld [vmem:[%s7 + $0x8] sm:$0xff]
  %v246 = vld [vmem:[%s7 + $0x10] sm:$0xff]
  %v247 = vld [vmem:[%s7 + $0x18] sm:$0xff]
  %v248 = vld [vmem:[%s8] sm:$0xff]
  %v249 = vld [vmem:[%s8 + $0x8] sm:$0xff]
  %v250 = vld [vmem:[%s8 + $0x10] sm:$0xff]
  %v251 = vld [vmem:[%s8 + $0x18] sm:$0xff]
  %253 = vset.pattern.permute.xlu0 0
  %254 = vperm.xlu0 %253, %v244
  %v255 = vpop.permute.xlu0 %254
  %258 = vset.pattern.permute.xlu0 0
  %259 = vperm.xlu0 %258, %v245
  %v260 = vpop.permute.xlu0 %259
  %263 = vset.pattern.permute.xlu0 0
  %264 = vperm.xlu0 %263, %v246
  %v265 = vpop.permute.xlu0 %264
  %268 = vset.pattern.permute.xlu0 0
  %269 = vperm.xlu0 %268, %v247
  %v270 = vpop.permute.xlu0 %269
  %v272 = vmul.f32 %v255, %v243
  %v273 = vmul.f32 %v260, %v243
  %v274 = vmul.f32 %v265, %v243
  %v275 = vmul.f32 %v270, %v243
  %277 = vset.pattern.permute.xlu0 0
  %278 = vperm.xlu0 %277, %v248
  %v279 = vpop.permute.xlu0 %278
  %282 = vset.pattern.permute.xlu0 0
  %283 = vperm.xlu0 %282, %v249
  %v284 = vpop.permute.xlu0 %283
  %287 = vset.pattern.permute.xlu0 0
  %288 = vperm.xlu0 %287, %v250
  %v289 = vpop.permute.xlu0 %288
  %292 = vset.pattern.permute.xlu0 0
  %293 = vperm.xlu0 %292, %v251
  %v294 = vpop.permute.xlu0 %293
  %v296 = vadd.f32 %v272, %v279
  %v297 = vadd.f32 %v273, %v284
  %v298 = vadd.f32 %v274, %v289
  %v299 = vadd.f32 %v275, %v294
  %v300 = vtanh.pop %v296
  %v301 = vtanh.pop %v297
  %v302 = vtanh.pop %v298
  %v303 = vtanh.pop %v299
  %v304 = vld [vmem:[%s9] sm:$0xff]
  %v305 = vld [vmem:[%s9 + $0x8] sm:$0xff]
  %v306 = vld [vmem:[%s9 + $0x10] sm:$0xff]
  %v307 = vld [vmem:[%s9 + $0x18] sm:$0xff]
  %v308 = vld [vmem:[%s10] sm:$0xff]
  %v309 = vld [vmem:[%s10 + $0x8] sm:$0xff]
  %v310 = vld [vmem:[%s10 + $0x10] sm:$0xff]
  %v311 = vld [vmem:[%s10 + $0x18] sm:$0xff]
  %313 = vset.pattern.permute.xlu0 0
  %314 = vperm.xlu0 %313, %v308
  %v315 = vpop.permute.xlu0 %314
  %318 = vset.pattern.permute.xlu0 0
  %319 = vperm.xlu0 %318, %v309
  %v320 = vpop.permute.xlu0 %319
  %323 = vset.pattern.permute.xlu0 0
  %324 = vperm.xlu0 %323, %v310
  %v325 = vpop.permute.xlu0 %324
  %328 = vset.pattern.permute.xlu0 0
  %329 = vperm.xlu0 %328, %v311
  %v330 = vpop.permute.xlu0 %329
  %v333 = vsel %vm153, %v304, 0
  %v336 = vsel %vm153, %v305, 0
  %v339 = vsel %vm153, %v306, 0
  %v342 = vsel %vm153, %v307, 0
  %344 = vmatpush.msra.mxu0 0.0
  %345 = vmatpush.msra.mxu0 0.0
  %346 = vmatpush.msra.mxu0 0.0
  %347 = vmatpush.msra.mxu0 0.0
  %348 = vmatpush.msra.mxu0 0.0
  %349 = vmatpush.msra.mxu0 0.0
  %350 = vmatpush.msra.mxu0 0.0
  %351 = vmatpush.msra.mxu0 0.0
  %352 = vmatpush.msra.mxu0 0.0
  %353 = vmatpush.msra.mxu0 0.0
  %354 = vmatpush.msra.mxu0 0.0
  %355 = vmatpush.msra.mxu0 0.0
  %356 = vmatpush.msra.mxu0 %v303
  %357 = vmatpush.msra.mxu0 %v302
  %358 = vmatpush.msra.mxu0 %v301
  %359 = vmatpush.msra.mxu0 %v300
  %360 = vmatmul.f32.gmra.mxu0 %v333
  %v361 = vpop.f32.mrf.mxu0
  %v362 = vadd.f32 %v315, %v361
  %363 = vmatmul.f32.gmra.mxu0 %v336
  %v364 = vpop.f32.mrf.mxu0
  %v365 = vadd.f32 %v320, %v364
  %366 = vmatmul.f32.gmra.mxu0 %v339
  %v367 = vpop.f32.mrf.mxu0
  %v368 = vadd.f32 %v325, %v367
  %369 = vmatmul.f32.gmra.mxu0 %v342
  %v370 = vpop.f32.mrf.mxu0
  %v371 = vadd.f32 %v330, %v370
  %372 = vdwg.mxu0
  %v373 = vtanh.pop %v362
  %v374 = vtanh.pop %v365
  %v375 = vtanh.pop %v368
  %v376 = vtanh.pop %v371
  %v377 = vld [vmem:[%s11] sm:$0x3]
  %v378 = vld [vmem:[%s12] sm:$0x3]
  %380 = vset.pattern.permute.xlu0 0
  %381 = vperm.xlu0 %380, %v378
  %v382 = vpop.permute.xlu0 %381
  %v385 = vsel %vm153, %v377, 0
  %387 = vmatpush.msra.mxu0 0.0
  %388 = vmatpush.msra.mxu0 0.0
  %389 = vmatpush.msra.mxu0 0.0
  %390 = vmatpush.msra.mxu0 0.0
  %391 = vmatpush.msra.mxu0 0.0
  %392 = vmatpush.msra.mxu0 0.0
  %393 = vmatpush.msra.mxu0 0.0
  %394 = vmatpush.msra.mxu0 0.0
  %395 = vmatpush.msra.mxu0 0.0
  %396 = vmatpush.msra.mxu0 0.0
  %397 = vmatpush.msra.mxu0 0.0
  %398 = vmatpush.msra.mxu0 0.0
  %399 = vmatpush.msra.mxu0 %v376
  %400 = vmatpush.msra.mxu0 %v375
  %401 = vmatpush.msra.mxu0 %v374
  %402 = vmatpush.msra.mxu0 %v373
  %403 = vmatmul.f32.gmra.mxu0 %v385
  %v404 = vpop.f32.mrf.mxu0
  %v405 = vadd.f32 %v382, %v404
  %406 = vdwg.mxu0
  %407 = vst [vmem:[%s13] sm:$0x3] %v405
  // Predicated region
  $region54: #{fused_autoencoder.1} parent=0 // pred_check
    _
  $region55: #{fused_autoencoder.1} parent=0 // pred_check_branch
    %409 = sbr.rel (0) target = $region57
  $region56: #{fused_autoencoder.1} parent=0 // pred_region
    _
  $region57: #{fused_autoencoder.1} parent=0 // pred_fallthru
    _
  // Predicated region
  $region58: #{fused_autoencoder.1} parent=0 // pred_check
    _
  $region59: #{fused_autoencoder.1} parent=0 // pred_check_branch
    %411 = sbr.rel (0) target = $region61
  $region60: #{fused_autoencoder.1} parent=0 // pred_region
    _
  $region61: #{fused_autoencoder.1} parent=0 // pred_fallthru
    _

</llo_original>
